<compile_context>
chip_gen: v7x
topology: tpu7x:2x2x1
jax: 0.10.0
libtpu: 0.0.40
codegen_flags: <defaults>
</compile_context>

<pallas_src>
import functools
import math

import jax
import jax.numpy as jnp
from jax import lax
from jax.experimental import pallas as pl
from jax.experimental.pallas import tpu as pltpu


def _round_up(x, m):
    return ((x + m - 1) // m) * m


# --------------------------------------------------------------------------- #
# Kernel
# --------------------------------------------------------------------------- #
def _head_matmul_kernel(x_ref, w_ref, b_ref, out_ref, xn_ref, *,
                        with_norm, ln_eps):
    # x_ref:   (TB, D)  input tile (resident across the output-column axis)
    # w_ref:   (D, TO)  pre-folded, pre-transposed weight tile
    # b_ref:   (1, TO)  pre-folded bias tile
    # out_ref: (TB, TO) logits tile
    # xn_ref:  (TB, D)  f32 scratch with the standardized x tile
    if with_norm:
        # Standardize x once per batch tile (parameter-free part of LayerNorm;
        # the gamma/beta affine is folded into w_ref / b_ref by the wrapper).
        @pl.when(pl.program_id(1) == 0)
        def _():
            xv = x_ref[...].astype(jnp.float32)
            mean = jnp.mean(xv, axis=-1, keepdims=True)
            xc = xv - mean
            var = jnp.mean(xc * xc, axis=-1, keepdims=True)
            xn_ref[...] = xc * lax.rsqrt(var + jnp.float32(ln_eps))  # EUP rsqrt
        xn = xn_ref[...]
    else:
        xn = x_ref[...].astype(jnp.float32)

    acc = jnp.dot(xn, w_ref[...].astype(jnp.float32),
                  preferred_element_type=jnp.float32)
    acc = acc + b_ref[...].astype(jnp.float32)
    out_ref[...] = acc.astype(out_ref.dtype)


# --------------------------------------------------------------------------- #
# Pallas wrapper: one fused (standardize) + matmul + bias call
# --------------------------------------------------------------------------- #
def _fused_linear(x, w_t, bias, *, with_norm, ln_eps,
                  tb_max=256, to_max=512):
    b, d = x.shape
    d2, o = w_t.shape
    assert d == d2, (d, d2)

    tb = min(tb_max, _round_up(b, 8))
    to = min(to_max, _round_up(o, 128))
    b_pad = _round_up(b, tb)
    o_pad = _round_up(o, to)

    x_p = x if b_pad == b else jnp.pad(x, ((0, b_pad - b), (0, 0)))
    w_p = w_t if o_pad == o else jnp.pad(w_t, ((0, 0), (0, o_pad - o)))
    bias2 = bias.reshape(1, o)
    b_p = bias2 if o_pad == o else jnp.pad(bias2, ((0, 0), (0, o_pad - o)))

    grid = (b_pad // tb, o_pad // to)
    kernel = functools.partial(_head_matmul_kernel,
                               with_norm=with_norm, ln_eps=ln_eps)

    out = pl.pallas_call(
        kernel,
        out_shape=jax.ShapeDtypeStruct((b_pad, o_pad), x.dtype),
        grid_spec=pltpu.PrefetchScalarGridSpec(
            num_scalar_prefetch=0,
            grid=grid,
            in_specs=[
                # x tile: independent of the output-column axis -> stays resident.
                pl.BlockSpec((tb, d), lambda i, j: (i, 0)),
                # weight tile: (D, TO), already transposed in the wrapper.
                pl.BlockSpec((d, to), lambda i, j: (0, j)),
                # bias tile.
                pl.BlockSpec((1, to), lambda i, j: (0, j)),
            ],
            out_specs=pl.BlockSpec((tb, to), lambda i, j: (i, j)),
            scratch_shapes=[pltpu.VMEM((tb, d), jnp.float32)],
        ),
        compiler_params=pltpu.CompilerParams(
            # batch axis parallel (shards across v7x's 2 TCs); output axis
            # arbitrary so the per-batch-tile scratch trick is valid.
            dimension_semantics=("parallel", "arbitrary")),
    )(x_p, w_p, b_p)

    return out[:b, :o]


# --------------------------------------------------------------------------- #
# Module-level forward
# --------------------------------------------------------------------------- #
def _fold_head_params(head, with_norm):
    """Fold LayerNorm affine into the Linear; return ((D, C) weight, (C,) bias)."""
    w = head["weight"]          # (nb_classes, D)  -- PyTorch Linear convention
    b = head["bias"]            # (nb_classes,)
    if with_norm:
        gamma = head["ln_weight"]   # (D,)
        beta = head["ln_bias"]      # (D,)
        w_eff = w * gamma[None, :]
        b_eff = b + w @ beta
    else:
        w_eff, b_eff = w, b
    return w_eff.T, b_eff       # (D, nb_classes), (nb_classes,)


def simple_continual_linear_forward(x, heads, *, feat_expand=False,
                                    with_norm=False, ln_eps=1e-5):
    """Pallas-backed forward of SimpleContinualLinear.

    heads: list of dicts with 'weight' (C_i, D), 'bias' (C_i,) and, if
           with_norm, 'ln_weight'/'ln_bias' (D,).
    x: (B, D) if not feat_expand, else (len(heads), B, D).
    Returns {'logits': (B, sum_i C_i)}.
    """
    if not feat_expand:
        # All heads share the same input -> fuse into a single matmul.
        folded = [_fold_head_params(h, with_norm) for h in heads]
        w_t = jnp.concatenate([f[0] for f in folded], axis=1)   # (D, O_total)
        bias = jnp.concatenate([f[1] for f in folded], axis=0)  # (O_total,)
        logits = _fused_linear(x, w_t, bias, with_norm=with_norm, ln_eps=ln_eps)
    else:
        outs = []
        for ti, h in enumerate(heads):
            w_t, bias = _fold_head_params(h, with_norm)
            outs.append(_fused_linear(x[ti], w_t, bias,
                                      with_norm=with_norm, ln_eps=ln_eps))
        logits = jnp.concatenate(outs, axis=1)
    return {"logits": logits}


# --------------------------------------------------------------------------- #
# Pure-JAX reference mirroring the PyTorch forward
# --------------------------------------------------------------------------- #
def simple_continual_linear_reference(x, heads, *, feat_expand=False,
                                      with_norm=False, ln_eps=1e-5):
    outs = []
    for ti, h in enumerate(heads):
        inp = x[ti] if feat_expand else x
        if with_norm:
            mean = jnp.mean(inp, axis=-1, keepdims=True)
            var = jnp.mean((inp - mean) ** 2, axis=-1, keepdims=True)
            inp = (inp - mean) * lax.rsqrt(var + ln_eps) \
                  * h["ln_weight"] + h["ln_bias"]
        outs.append(jnp.dot(inp, h["weight"].T, precision="highest") + h["bias"])
    return jnp.concatenate(outs, axis=1)


# --------------------------------------------------------------------------- #
# Demo / self-test
# --------------------------------------------------------------------------- #
def _make_head(key, embed_dim, nb_classes, with_norm):
    kw, kb, kg, kbeta = jax.random.split(key, 4)
    # trunc_normal_(std=0.02) equivalent
    weight = 0.02 * jax.random.truncated_normal(
        kw, -2.0, 2.0, (nb_classes, embed_dim), dtype=jnp.float32)
    bias = 0.02 * jax.random.normal(kb, (nb_classes,), dtype=jnp.float32)
    head = {"weight": weight, "bias": bias}
    if with_norm:
        head["ln_weight"] = 1.0 + 0.1 * jax.random.normal(
            kg, (embed_dim,), dtype=jnp.float32)
        head["ln_bias"] = 0.1 * jax.random.normal(
            kbeta, (embed_dim,), dtype=jnp.float32)
    return head


if __name__ == "__main__":
    embed_dim = 32
    batch = 4
    nb_classes_per_head = [4, 6]    # initial head + one update() head

    key = jax.random.PRNGKey(0)
    kx, kxe, *hkeys = jax.random.split(key, 2 + len(nb_classes_per_head))

    x = jax.random.normal(kx, (batch, embed_dim), dtype=jnp.float32)
    x_exp = jax.random.normal(
        kxe, (len(nb_classes_per_head), batch, embed_dim), dtype=jnp.float32)

    def check(out, ref, shape):
        out = jax.block_until_ready(out)
        assert out.shape == shape, (out.shape, shape)
        err = float(jnp.max(jnp.abs(out - ref)))
        assert jnp.allclose(out, ref, atol=1e-5, rtol=1e-5), err

    total = sum(nb_classes_per_head)

    # 1) with_norm=True, shared input (feat_expand=False): fully fused path.
    heads_n = [_make_head(hk, embed_dim, nc, True)
               for hk, nc in zip(hkeys, nb_classes_per_head)]
    out1 = simple_continual_linear_forward(x, heads_n, with_norm=True)["logits"]
    ref1 = simple_continual_linear_reference(x, heads_n, with_norm=True)
    check(out1, ref1, (batch, total))

    # 2) with_norm=False (plain Linear heads, bias included).
    heads_p = [_make_head(hk, embed_dim, nc, False)
               for hk, nc in zip(hkeys, nb_classes_per_head)]
    out2 = simple_continual_linear_forward(x, heads_p, with_norm=False)["logits"]
    ref2 = simple_continual_linear_reference(x, heads_p, with_norm=False)
    check(out2, ref2, (batch, total))

    # 3) feat_expand=True: each head gets its own feature slice x[ti].
    out3 = simple_continual_linear_forward(
        x_exp, heads_n, feat_expand=True, with_norm=True)["logits"]
    ref3 = simple_continual_linear_reference(
        x_exp, heads_n, feat_expand=True, with_norm=True)
    check(out3, ref3, (batch, total))

    # TODO(synk): backup()/recall()/update() are host-side parameter management
    # (list of heads + state_dict copies); they have no kernel equivalent.
    print("KERNEL_OK")
</pallas_src>

<mosaic_0001>
module attributes {stable_mosaic.version = 11 : i64} {
  func.func @_head_matmul_kernel(%arg0: i32, %arg1: i32, %arg2: memref<8x32xf32, #tpu.memory_space<vmem>>, %arg3: memref<32x128xf32, #tpu.memory_space<vmem>>, %arg4: memref<1x128xf32, #tpu.memory_space<vmem>>, %arg5: memref<8x128xf32, #tpu.memory_space<vmem>>, %arg6: memref<8x32xf32, #tpu.memory_space<vmem>>) attributes {dimension_semantics = [#tpu.dimension_semantics<parallel>, #tpu.dimension_semantics<arbitrary>], iteration_bounds = array<i64: 1, 1>, scalar_prefetch = 0 : i64, scratch_operands = 1 : i64, tpu.core_type = #tpu.core_type<tc>, window_params = [{transform_indices = @transform_0, window_bounds = array<i64: 8, 32>}, {transform_indices = @transform_1, window_bounds = array<i64: 32, 128>}, {transform_indices = @transform_2, window_bounds = array<i64: 1, 128>}, {transform_indices = @transform_3, window_bounds = array<i64: 8, 128>}]} {
    %c0_i32 = arith.constant 0 : i32
    %0 = arith.cmpi eq, %arg1, %c0_i32 : i32
    %1 = arith.extui %0 : i1 to i32
    %c0_i32_0 = arith.constant 0 : i32
    %2 = arith.cmpi ne, %1, %c0_i32_0 : i32
    scf.if %2 {
      %c0_8 = arith.constant 0 : index
      %c0_9 = arith.constant 0 : index
      %10 = vector.load %arg2[%c0_8, %c0_9] : memref<8x32xf32, #tpu.memory_space<vmem>>, vector<8x32xf32>
      %cst_10 = arith.constant dense<0.000000e+00> : vector<8xf32>
      %11 = vector.multi_reduction <add>, %10, %cst_10 [1] : vector<8x32xf32> to vector<8xf32>
      %12 = vector.shape_cast %11 : vector<8xf32> to vector<8x1xf32>
      %cst_11 = arith.constant 3.200000e+01 : f32
      %13 = vector.broadcast %cst_11 : f32 to vector<8x1xf32>
      %14 = arith.divf %12, %13 : vector<8x1xf32>
      %15 = vector.broadcast %14 : vector<8x1xf32> to vector<8x32xf32>
      %16 = arith.subf %10, %15 : vector<8x32xf32>
      %17 = arith.mulf %16, %16 : vector<8x32xf32>
      %cst_12 = arith.constant dense<0.000000e+00> : vector<8xf32>
      %18 = vector.multi_reduction <add>, %17, %cst_12 [1] : vector<8x32xf32> to vector<8xf32>
      %19 = vector.shape_cast %18 : vector<8xf32> to vector<8x1xf32>
      %cst_13 = arith.constant 3.200000e+01 : f32
      %20 = vector.broadcast %cst_13 : f32 to vector<8x1xf32>
      %21 = arith.divf %19, %20 : vector<8x1xf32>
      %cst_14 = arith.constant 9.99999974E-6 : f32
      %22 = vector.broadcast %cst_14 : f32 to vector<8x1xf32>
      %23 = arith.addf %21, %22 : vector<8x1xf32>
      %24 = math.rsqrt %23 : vector<8x1xf32>
      %25 = vector.broadcast %24 : vector<8x1xf32> to vector<8x32xf32>
      %26 = arith.mulf %16, %25 : vector<8x32xf32>
      %c0_15 = arith.constant 0 : index
      %c0_16 = arith.constant 0 : index
      %27 = vector.load %arg6[%c0_15, %c0_16] : memref<8x32xf32, #tpu.memory_space<vmem>>, vector<8x32xf32>
      tpu.vector_store %arg6[%c0_15, %c0_16], %26 {strides = array<i32>} : memref<8x32xf32, #tpu.memory_space<vmem>>, vector<8x32xf32>,
    } else {
    }
    %c0 = arith.constant 0 : index
    %c0_1 = arith.constant 0 : index
    %3 = vector.load %arg6[%c0, %c0_1] : memref<8x32xf32, #tpu.memory_space<vmem>>, vector<8x32xf32>
    %c0_2 = arith.constant 0 : index
    %c0_3 = arith.constant 0 : index
    %4 = vector.load %arg3[%c0_2, %c0_3] : memref<32x128xf32, #tpu.memory_space<vmem>>, vector<32x128xf32>
    %cst = arith.constant dense<0.000000e+00> : vector<8x128xf32>
    %5 = tpu.matmul %3, %4, %cst {dimension_numbers = #tpu.dot_dimension_numbers<[1], [0], [0], [1], [0, 0, 1, 1], [], []>} : vector<8x32xf32>, vector<32x128xf32>, vector<8x128xf32> -> vector<8x128xf32>
    %c0_4 = arith.constant 0 : index
    %c0_5 = arith.constant 0 : index
    %6 = vector.load %arg4[%c0_4, %c0_5] : memref<1x128xf32, #tpu.memory_space<vmem>>, vector<1x128xf32>
    %7 = vector.broadcast %6 : vector<1x128xf32> to vector<8x128xf32>
    %8 = arith.addf %5, %7 : vector<8x128xf32>
    %c0_6 = arith.constant 0 : index
    %c0_7 = arith.constant 0 : index
    %9 = vector.load %arg5[%c0_6, %c0_7] : memref<8x128xf32, #tpu.memory_space<vmem>>, vector<8x128xf32>
    tpu.vector_store %arg5[%c0_6, %c0_7], %8 {strides = array<i32>} : memref<8x128xf32, #tpu.memory_space<vmem>>, vector<8x128xf32>,
    return
  }
  func.func @transform_0(%arg0: i32, %arg1: i32) -> (i32, i32) {
    %c0_i32 = arith.constant 0 : i32
    %c0_i32_0 = arith.constant 0 : i32
    return %arg0, %c0_i32 : i32, i32
  }
  func.func @transform_1(%arg0: i32, %arg1: i32) -> (i32, i32) {
    %c0_i32 = arith.constant 0 : i32
    %c0_i32_0 = arith.constant 0 : i32
    return %c0_i32, %arg1 : i32, i32
  }
  func.func @transform_2(%arg0: i32, %arg1: i32) -> (i32, i32) {
    %c0_i32 = arith.constant 0 : i32
    %c0_i32_0 = arith.constant 0 : i32
    return %c0_i32, %arg1 : i32, i32
  }
  func.func @transform_3(%arg0: i32, %arg1: i32) -> (i32, i32) {
    %c0_i32 = arith.constant 0 : i32
    return %arg0, %arg1 : i32, i32
  }
}

</mosaic_0001>

<llo_original>
// kernel: tpu_custom_call.1
$region0: #{tpu_custom_call.1}
  #allocation0 [shape = 'u32[]', space=smem, size = 0x4, offset = 0x4, fixed_abs, tag = 'smem constant byte address 0x4 - core index']
  #allocation1 [shape = 'u32[144,128]{1,0:T(1,128)}', space=vmem, size = 0x12000, scoped, tag = 'internal scratch']
  #allocation2 [shape = 'f32[8,32]{1,0:T(8,128)}', space=vmem, size = 0x1000, scoped, tag = 'scratch operand']
  %s0 = inlined_call_operand.hbm [shape: f32[8,32], index: 0, kind: input, shape index: {}]
  %s1 = inlined_call_operand.hbm [shape: f32[32,128], index: 1, kind: input, shape index: {}]
  %s2 = inlined_call_operand.vmem [shape: f32[1,128], index: 2, kind: input, shape index: {}]
  %s3 = inlined_call_operand.hbm [shape: f32[8,128], index: 3, kind: output, shape index: {}]
  %s4 = sld [smem:[#allocation0]]
  $region34: #{tpu_custom_call.1} parent=0
    _
  %s6 = ssub.s32 1, %s4
  %s7 = scalar_select 0, %s6, %s4
  $region1: #{tpu_custom_call.1} parent=0
    #allocation3 [shape = 'u8[4096]{0}', space=vmem, size = 0x1000, scoped, tag = 'input window, operand 0, single buffered']
    #allocation4 [shape = 's32[1]{0}', space=sflag, size = 0x4, scoped, tag = 'scoped memory for tpu_custom_call.1']
    #allocation5 [shape = 's32[1]{0}', space=sflag, size = 0x4, scoped, tag = 'scoped memory for tpu_custom_call.1']
    #allocation6 [shape = 'u8[16384]{0}', space=vmem, size = 0x4000, scoped, tag = 'input window, operand 1, single buffered']
    #allocation7 [shape = 's32[1]{0}', space=sflag, size = 0x4, scoped, tag = 'scoped memory for tpu_custom_call.1']
    #allocation8 [shape = 'u8[4096]{0}', space=vmem, size = 0x1000, scoped, tag = 'output window, operand 0, single buffered']
    %8 = vsyncpa [#allocation4], 0
    %9 = vsyncpa [#allocation7], 0
    %10 = vsyncpa [#allocation5], 0
    // Predicated region
    $region2: #{tpu_custom_call.1} parent=1 // pred_check
      _
    $region3: #{tpu_custom_call.1} parent=1 // pred_check_branch
      %12 = sbr.rel (0) target = $region5
    $region4: #{tpu_custom_call.1} parent=1 // pred_region
      %s14 = ssub.s32 128, 128
      %15 = vsyncadd [#allocation4], %s14
      %s17 = sshll.u32 [#allocation3], 4
      %s18 = int_to_ptr.vmem [resolvable:$true] %s17
      %20 = dma.hbm_to_vmem [thread:$0]  %s0, 128, %s18, [#allocation4]
    $region5: #{tpu_custom_call.1} parent=1 // pred_fallthru
      _
    // Predicated region
    $region6: #{tpu_custom_call.1} parent=1 // pred_check
      _
    $region7: #{tpu_custom_call.1} parent=1 // pred_check_branch
      %22 = sbr.rel (0) target = $region9
    $region8: #{tpu_custom_call.1} parent=1 // pred_region
      %s24 = ssub.s32 512, 512
      %25 = vsyncadd [#allocation7], %s24
      %s26 = sshll.u32 [#allocation6], 4
      %s27 = int_to_ptr.vmem [resolvable:$true] %s26
      %32 = dma.hbm_to_vmem [thread:$0]  %s1, 512, %s27, [#allocation7], 128, 128, 8
    $region9: #{tpu_custom_call.1} parent=1 // pred_fallthru
      _
    // Predicated region
    $region10: #{tpu_custom_call.1} parent=1 // pred_check
      _
    $region11: #{tpu_custom_call.1} parent=1 // pred_check_branch
      %34 = sbr.rel (0) target = $region13
    $region12: #{tpu_custom_call.1} parent=1 // pred_region
      _
    $region13: #{tpu_custom_call.1} parent=1 // pred_fallthru
      _
    // Predicated region
    $region14: #{tpu_custom_call.1} parent=1 // pred_check
      _
    $region15: #{tpu_custom_call.1} parent=1 // pred_check_branch
      %36 = sbr.rel (0) target = $region17
    $region16: #{tpu_custom_call.1} parent=1 // pred_region
      %37 = dma.done [#allocation4], 128
    $region17: #{tpu_custom_call.1} parent=1 // pred_fallthru
      _
    // Predicated region
    $region18: #{tpu_custom_call.1} parent=1 // pred_check
      _
    $region19: #{tpu_custom_call.1} parent=1 // pred_check_branch
      %39 = sbr.rel (0) target = $region21
    $region20: #{tpu_custom_call.1} parent=1 // pred_region
      %40 = dma.done [#allocation7], 512
    $region21: #{tpu_custom_call.1} parent=1 // pred_fallthru
      _
    %p41 = scmp.eq.s32.totalorder 0, 0
    // Predicated region
    $region22: #{tpu_custom_call.1} parent=1 // pred_check
      %p42 = pneg %p41
    $region23: #{tpu_custom_call.1} parent=1 // pred_check_branch
      %44 = sbr.rel (%p42) target = $region25
    $region24: #{tpu_custom_call.1} parent=1 // pred_region
      %v45 = vld [vmem:[#allocation3] sm:$0xff]
      %vm46 = vcmask 261120
      %v47 = vsel %vm46, %v45, 0.0
      %48 = vadd.xlane.f32.xlu0 %v47
      %v49 = vpop.xlane.xlu0 %48
      %v50 = vrcp.pop 32.0
      %v51 = vmul.f32 %v49, %v50
      %v52 = vsub.f32 %v45, %v51
      %v53 = vmul.f32 %v52, %v52
      %v54 = vsel %vm46, %v53, 0.0
      %55 = vadd.xlane.f32.xlu0 %v54
      %v56 = vpop.xlane.xlu0 %55
      %v57 = vmul.f32 %v56, %v50
      %v58 = vadd.f32 %v57, 1e-05
      %v59 = vrsqrt.pop %v58
      %v60 = vmul.f32 %v52, %v59
      %61 = vst.msk [vmem:[#allocation2] sm:$0xff] %vm46, %v60
    $region25: #{tpu_custom_call.1} parent=1 // pred_fallthru
      _
    %v62 = vld [vmem:[#allocation2] sm:$0xff]
    %v63 = vld [vmem:[#allocation6] sm:$0xff]
    %v64 = vld [vmem:[#allocation6 + $0x8] sm:$0xff]
    %v65 = vld [vmem:[#allocation6 + $0x10] sm:$0xff]
    %v66 = vld [vmem:[#allocation6 + $0x18] sm:$0xff]
    %v67 = vld [vmem:[%s2] sm:$0x1]
    %v69 = vlaneseq
    %v70 = vshrl.u32 %v69, 7
    %v71 = vsub.s32 0, %v70
    %v72 = vrot.slane %v67, %v71
    %vm74 = vcmask 261120
    %v76 = vsel %vm74, %v62, 0
    %78 = vmatprep.subr.mxu0 0.0
    %79 = vmatpush1.msra.mxu0 %v63
    %80 = vmatprep.subr.mxu0 0.0
    %81 = vmatpush1.msra.mxu0 %v64
    %82 = vmatprep.subr.mxu0 0.0
    %83 = vmatpush1.msra.mxu0 %v65
    %84 = vmatprep.subr.mxu0 0.0
    %85 = vmatpush1.msra.mxu0 %v66
    %86 = vmatprep.subr.mxu0 0.0
    %87 = vmatpush1.msra.mxu0 0.0
    %88 = vmatprep.subr.mxu0 0.0
    %89 = vmatpush1.msra.mxu0 0.0
    %90 = vmatprep.subr.mxu0 0.0
    %91 = vmatpush1.msra.mxu0 0.0
    %92 = vmatprep.subr.mxu0 0.0
    %93 = vmatpush1.msra.mxu0 0.0
    %94 = vmatprep.subr.mxu0 0.0
    %95 = vmatpush1.msra.mxu0 0.0
    %96 = vmatprep.subr.mxu0 0.0
    %97 = vmatpush1.msra.mxu0 0.0
    %98 = vmatprep.subr.mxu0 0.0
    %99 = vmatpush1.msra.mxu0 0.0
    %100 = vmatprep.subr.mxu0 0.0
    %101 = vmatpush1.msra.mxu0 0.0
    %102 = vmatprep.subr.mxu0 0.0
    %103 = vmatpush1.msra.mxu0 0.0
    %104 = vmatprep.subr.mxu0 0.0
    %105 = vmatpush1.msra.mxu0 0.0
    %106 = vmatprep.subr.mxu0 0.0
    %107 = vmatpush1.msra.mxu0 0.0
    %108 = vmatprep.subr.mxu0 0.0
    %109 = vmatpush1.msra.mxu0 0.0
    %110 = vmatprep.subr.mxu0 0.0
    %111 = vmatpush1.msra.mxu0 0.0
    %112 = vmatprep.subr.mxu0 0.0
    %113 = vmatpush1.msra.mxu0 0.0
    %114 = vmatprep.subr.mxu0 0.0
    %115 = vmatpush1.msra.mxu0 0.0
    %116 = vmatprep.subr.mxu0 0.0
    %117 = vmatpush1.msra.mxu0 0.0
    %118 = vmatprep.subr.mxu0 0.0
    %119 = vmatpush1.msra.mxu0 0.0
    %120 = vmatprep.subr.mxu0 0.0
    %121 = vmatpush1.msra.mxu0 0.0
    %122 = vmatprep.subr.mxu0 0.0
    %123 = vmatpush1.msra.mxu0 0.0
    %124 = vmatprep.subr.mxu0 0.0
    %125 = vmatpush1.msra.mxu0 0.0
    %126 = vmatprep.subr.mxu0 0.0
    %127 = vmatpush1.msra.mxu0 0.0
    %128 = vmatprep.subr.mxu0 0.0
    %129 = vmatpush1.msra.mxu0 0.0
    %130 = vmatprep.subr.mxu0 0.0
    %131 = vmatpush1.msra.mxu0 0.0
    %132 = vmatprep.subr.mxu0 0.0
    %133 = vmatpush1.msra.mxu0 0.0
    %134 = vmatprep.subr.mxu0 0.0
    %135 = vmatpush1.msra.mxu0 0.0
    %136 = vmatprep.subr.mxu0 0.0
    %137 = vmatpush1.msra.mxu0 0.0
    %138 = vmatprep.subr.mxu0 0.0
    %139 = vmatpush1.msra.mxu0 0.0
    %140 = vmatprep.subr.mxu0 0.0
    %141 = vmatpush1.msra.mxu0 0.0
    %142 = vmatprep.mubr.f32.mxu0 0.0
    %143 = vmatmul.mubr.f32.gmra.mrb[0].mxu0 %v76
    %v144 = vpop.f32.mrb[0].mxu0
    %v145 = vadd.f32 %v72, %v144
    %v146 = vpop.f32.mrb[0].mxu0
    %147 = vdwg.mxu0
    %148 = vst [vmem:[#allocation8] sm:$0xff] %v145
    // Predicated region
    $region26: #{tpu_custom_call.1} parent=1 // pred_check
      _
    $region27: #{tpu_custom_call.1} parent=1 // pred_check_branch
      %150 = sbr.rel (0) target = $region29
    $region28: #{tpu_custom_call.1} parent=1 // pred_region
      %s152 = ssub.s32 128, 128
      %153 = vsyncadd [#allocation5], %s152
      %s155 = sshll.u32 [#allocation8], 4
      %s156 = int_to_ptr.vmem [resolvable:$true] %s155
      %158 = dma.vmem_to_hbm [thread:$0]  %s156, 128, %s3, [#allocation5]
    $region29: #{tpu_custom_call.1} parent=1 // pred_fallthru
      _
    // Predicated region
    $region30: #{tpu_custom_call.1} parent=1 // pred_check
      _
    $region31: #{tpu_custom_call.1} parent=1 // pred_check_branch
      %160 = sbr.rel (0) target = $region33
    $region32: #{tpu_custom_call.1} parent=1 // pred_region
      %161 = dma.done [#allocation5], 128
    $region33: #{tpu_custom_call.1} parent=1 // pred_fallthru
      _
    %162 = vsyncpa [#allocation4], 1
    %163 = vsyncpa [#allocation7], 1
    %164 = vsyncpa [#allocation5], 1

</llo_original>
